<compile_context>
chip_gen: v6e
topology: v6e:2x2x1
jax: 0.10.0
libtpu: 0.0.40
codegen_flags: <defaults>
</compile_context>

<pallas_src>
import jax
import jax.numpy as jnp
from jax.experimental import pallas as pl
from jax.experimental.pallas import tpu as pltpu


TRUE_Y0 = jnp.asarray([[1.0, 1.0]], dtype=jnp.float32)  # [1, 2]

# Lanes per sublane-row per grid step.  Block = (2, 8, _MAX_TILE_L) f32
# = 2 MiB, i.e. 4 MiB of in+out HBM traffic per step -> per-step overhead is
# amortized on every chip; double-buffered VMEM footprint ~8 MiB.
_MAX_TILE_L = 32768


def _lambda2_kernel(params_ref, y_ref, o_ref):
    # params_ref : SMEM f32[10] = [y0_0, y0_1, a00, a01, a10, a11, b00, b01, b10, b11]
    # y_ref/o_ref: VMEM blocks [2, 8, tile_l] (feature-major; batch packed
    #              densely across full 8x128 vregs).
    y0_0 = params_ref[0]
    y0_1 = params_ref[1]
    a00, a01 = params_ref[2], params_ref[3]
    a10, a11 = params_ref[4], params_ref[5]
    b00, b01 = params_ref[6], params_ref[7]
    b10, b11 = params_ref[8], params_ref[9]

    yr0 = y_ref[0]  # [8, tile_l]  feature 0 of every batch element in the tile
    yr1 = y_ref[1]  # [8, tile_l]  feature 1

    # xTx0 = sum(y * true_y0, feature axis)
    xtx0 = yr0 * y0_0 + yr1 * y0_1
    sig = jax.nn.sigmoid(xtx0)  # single EUP sigmoid; sigmoid(-x) == 1 - sig

    ym0, ym1 = yr0 - y0_0, yr1 - y0_1  # y - true_y0
    yp0, yp1 = yr0 + y0_0, yr1 + y0_1  # y + true_y0

    # Unrolled 2x2 linears on the VPU: out[:, j] = x[:, 0]*W[j, 0] + x[:, 1]*W[j, 1]
    a_out0 = ym0 * a00 + ym1 * a01
    a_out1 = ym0 * a10 + ym1 * a11
    b_out0 = yp0 * b00 + yp1 * b01
    b_out1 = yp0 * b10 + yp1 * b11

    # sigmoid(x)*a + sigmoid(-x)*b  ==  b + sigmoid(x)*(a - b)
    o_ref[0] = b_out0 + sig * (a_out0 - b_out0)
    o_ref[1] = b_out1 + sig * (a_out1 - b_out1)


def _pack_params(A, B, true_y0):
    """Flat 1-D SMEM parameter vector: [y0(2), A(4 row-major), B(4 row-major)]."""
    return jnp.concatenate([
        true_y0.astype(jnp.float32).reshape(-1),
        A.astype(jnp.float32).reshape(-1),
        B.astype(jnp.float32).reshape(-1),
    ])  # f32[10]


def _choose_tile(n, max_tile_l):
    """Pick lanes-per-sublane tile and padded batch size (multiple of 8*tile_l)."""
    n_min = max(1024, -(-n // 1024) * 1024)          # pad batch to a full (8,128) group
    tile_l = min(max_tile_l, n_min // 8)             # lanes per sublane row per step
    tile_l = max(128, (tile_l // 128) * 128)         # keep lane-aligned
    group = 8 * tile_l
    n_pad = -(-n // group) * group
    return tile_l, n_pad


def lambda2_forward_slab(y_slab, params, *, tile_l):
    """Kernel entry on a lane-dense slab.

    y_slab: [2, 8, L] float32, L a multiple of tile_l (and of 128).
    params: f32[10] packed as in _pack_params.
    Returns the [2, 8, L] output slab.  Callers that keep state in this layout
    (e.g. an ODE loop) avoid all wrapper transpose/pad HBM passes.
    """
    _, _, L = y_slab.shape
    assert L % tile_l == 0, (L, tile_l)
    n_blocks = L // tile_l
    return pl.pallas_call(
        _lambda2_kernel,
        out_shape=jax.ShapeDtypeStruct((2, 8, L), jnp.float32),
        grid=(n_blocks,),
        in_specs=[
            pl.BlockSpec(memory_space=pltpu.MemorySpace.SMEM),        # params (flat)
            pl.BlockSpec((2, 8, tile_l), lambda i: (0, 0, i)),        # y slab (VMEM)
        ],
        out_specs=pl.BlockSpec((2, 8, tile_l), lambda i: (0, 0, i)),
        compiler_params=pltpu.CompilerParams(
            dimension_semantics=("parallel",)),
    )(params, y_slab)


def lambda2_forward(t, y, A, B, true_y0=TRUE_Y0, max_tile_l=_MAX_TILE_L):
    """Pallas implementation of Lambda2.forward(t, y).

    t is unused by the forward pass (kept for API parity with the ODE func).
    y: [N, 2]; A, B: [2, 2] nn.Linear weights; returns [N, 2] float32.
    """
    del t
    y = y.astype(jnp.float32)
    N = y.shape[0]

    tile_l, n_pad = _choose_tile(N, max_tile_l)
    L = n_pad // 8

    # Single fused pad + transpose + reshape into the lane-dense [2, 8, L] slab.
    y_slab = jnp.pad(y, ((0, n_pad - N), (0, 0))).T.reshape(2, 8, L)

    out_slab = lambda2_forward_slab(y_slab, _pack_params(A, B, true_y0),
                                    tile_l=tile_l)

    return out_slab.reshape(2, n_pad).T[:N]


def _reference_forward(t, y, A, B, true_y0=TRUE_Y0):
    """Pure-JAX reference matching the PyTorch module (N == 1 semantics)."""
    del t
    xtx0 = jnp.sum(y * true_y0, axis=1, keepdims=True)
    return (jax.nn.sigmoid(xtx0) * ((y - true_y0) @ A.T)
            + jax.nn.sigmoid(-xtx0) * ((y + true_y0) @ B.T))


if __name__ == "__main__":
    key = jax.random.PRNGKey(0)
    k_a, k_b, k_y1, k_yn, k_ym = jax.random.split(key, 5)

    # nn.Linear(2, 2, bias=False) weights.
    A = jax.random.normal(k_a, (2, 2), dtype=jnp.float32)
    B = jax.random.normal(k_b, (2, 2), dtype=jnp.float32)
    t = jnp.float32(0.0)

    # Case 1: the ODE-demo shape (single state row matching true_y0 [1, 2]).
    y1 = jax.random.normal(k_y1, (1, 2), dtype=jnp.float32)
    out1 = jax.block_until_ready(lambda2_forward(t, y1, A, B))
    ref1 = _reference_forward(t, y1, A, B)
    assert out1.shape == (1, 2) and out1.dtype == jnp.float32
    assert jnp.allclose(out1, ref1, atol=1e-5, rtol=1e-5), (out1, ref1)

    # Case 2: batched states (exercises padding + the [2, 8, L] single-tile path).
    yn = jax.random.normal(k_yn, (200, 2), dtype=jnp.float32)
    outn = jax.block_until_ready(lambda2_forward(t, yn, A, B))
    refn = _reference_forward(t, yn, A, B)
    assert outn.shape == (200, 2) and outn.dtype == jnp.float32
    assert jnp.allclose(outn, refn, atol=1e-5, rtol=1e-5)

    # Case 3: force multiple grid steps (small tile cap) to exercise the tiled
    # "parallel" path without needing a huge batch.
    ym = jax.random.normal(k_ym, (3000, 2), dtype=jnp.float32)
    outm = jax.block_until_ready(lambda2_forward(t, ym, A, B, max_tile_l=128))
    refm = _reference_forward(t, ym, A, B)
    assert outm.shape == (3000, 2) and outm.dtype == jnp.float32
    assert jnp.allclose(outm, refm, atol=1e-5, rtol=1e-5)

    print("KERNEL_OK")
</pallas_src>

<mosaic_0001>
module attributes {stable_mosaic.version = 11 : i64} {
  func.func @_lambda2_kernel(%arg0: i32, %arg1: memref<10xf32, #tpu.memory_space<smem>>, %arg2: memref<2x8x128xf32, #tpu.memory_space<vmem>>, %arg3: memref<2x8x128xf32, #tpu.memory_space<vmem>>) attributes {dimension_semantics = [#tpu.dimension_semantics<parallel>], iteration_bounds = array<i64: 1>, scalar_prefetch = 0 : i64, scratch_operands = 0 : i64, tpu.core_type = #tpu.core_type<tc>, window_params = [{transform_indices = @transform_0, window_bounds = array<i64: 10>}, {transform_indices = @transform_1, window_bounds = array<i64: 2, 8, 128>}, {transform_indices = @transform_2, window_bounds = array<i64: 2, 8, 128>}]} {
    %c0 = arith.constant 0 : index
    %0 = memref.load %arg1[%c0] : memref<10xf32, #tpu.memory_space<smem>>
    %c1 = arith.constant 1 : index
    %1 = memref.load %arg1[%c1] : memref<10xf32, #tpu.memory_space<smem>>
    %c2 = arith.constant 2 : index
    %2 = memref.load %arg1[%c2] : memref<10xf32, #tpu.memory_space<smem>>
    %c3 = arith.constant 3 : index
    %3 = memref.load %arg1[%c3] : memref<10xf32, #tpu.memory_space<smem>>
    %c4 = arith.constant 4 : index
    %4 = memref.load %arg1[%c4] : memref<10xf32, #tpu.memory_space<smem>>
    %c5 = arith.constant 5 : index
    %5 = memref.load %arg1[%c5] : memref<10xf32, #tpu.memory_space<smem>>
    %c6 = arith.constant 6 : index
    %6 = memref.load %arg1[%c6] : memref<10xf32, #tpu.memory_space<smem>>
    %c7 = arith.constant 7 : index
    %7 = memref.load %arg1[%c7] : memref<10xf32, #tpu.memory_space<smem>>
    %c8 = arith.constant 8 : index
    %8 = memref.load %arg1[%c8] : memref<10xf32, #tpu.memory_space<smem>>
    %c9 = arith.constant 9 : index
    %9 = memref.load %arg1[%c9] : memref<10xf32, #tpu.memory_space<smem>>
    %c0_0 = arith.constant 0 : index
    %c0_1 = arith.constant 0 : index
    %c0_2 = arith.constant 0 : index
    %10 = vector.load %arg2[%c0_0, %c0_1, %c0_2] : memref<2x8x128xf32, #tpu.memory_space<vmem>>, vector<1x8x128xf32>
    %11 = vector.shape_cast %10 : vector<1x8x128xf32> to vector<8x128xf32>
    %c1_3 = arith.constant 1 : index
    %c0_4 = arith.constant 0 : index
    %c0_5 = arith.constant 0 : index
    %12 = vector.load %arg2[%c1_3, %c0_4, %c0_5] : memref<2x8x128xf32, #tpu.memory_space<vmem>>, vector<1x8x128xf32>
    %13 = vector.shape_cast %12 : vector<1x8x128xf32> to vector<8x128xf32>
    %14 = vector.broadcast %0 : f32 to vector<8x128xf32>
    %15 = arith.mulf %11, %14 : vector<8x128xf32>
    %16 = vector.broadcast %1 : f32 to vector<8x128xf32>
    %17 = arith.mulf %13, %16 : vector<8x128xf32>
    %18 = arith.addf %15, %17 : vector<8x128xf32>
    %19 = arith.negf %18 : vector<8x128xf32>
    %20 = math.exp %19 : vector<8x128xf32>
    %cst = arith.constant 1.000000e+00 : f32
    %21 = vector.broadcast %cst : f32 to vector<8x128xf32>
    %22 = arith.addf %21, %20 : vector<8x128xf32>
    %23 = arith.divf %21, %22 : vector<8x128xf32>
    %24 = vector.broadcast %0 : f32 to vector<8x128xf32>
    %25 = arith.subf %11, %24 : vector<8x128xf32>
    %26 = vector.broadcast %1 : f32 to vector<8x128xf32>
    %27 = arith.subf %13, %26 : vector<8x128xf32>
    %28 = vector.broadcast %0 : f32 to vector<8x128xf32>
    %29 = arith.addf %11, %28 : vector<8x128xf32>
    %30 = vector.broadcast %1 : f32 to vector<8x128xf32>
    %31 = arith.addf %13, %30 : vector<8x128xf32>
    %32 = vector.broadcast %2 : f32 to vector<8x128xf32>
    %33 = arith.mulf %25, %32 : vector<8x128xf32>
    %34 = vector.broadcast %3 : f32 to vector<8x128xf32>
    %35 = arith.mulf %27, %34 : vector<8x128xf32>
    %36 = arith.addf %33, %35 : vector<8x128xf32>
    %37 = vector.broadcast %4 : f32 to vector<8x128xf32>
    %38 = arith.mulf %25, %37 : vector<8x128xf32>
    %39 = vector.broadcast %5 : f32 to vector<8x128xf32>
    %40 = arith.mulf %27, %39 : vector<8x128xf32>
    %41 = arith.addf %38, %40 : vector<8x128xf32>
    %42 = vector.broadcast %6 : f32 to vector<8x128xf32>
    %43 = arith.mulf %29, %42 : vector<8x128xf32>
    %44 = vector.broadcast %7 : f32 to vector<8x128xf32>
    %45 = arith.mulf %31, %44 : vector<8x128xf32>
    %46 = arith.addf %43, %45 : vector<8x128xf32>
    %47 = vector.broadcast %8 : f32 to vector<8x128xf32>
    %48 = arith.mulf %29, %47 : vector<8x128xf32>
    %49 = vector.broadcast %9 : f32 to vector<8x128xf32>
    %50 = arith.mulf %31, %49 : vector<8x128xf32>
    %51 = arith.addf %48, %50 : vector<8x128xf32>
    %52 = arith.subf %36, %46 : vector<8x128xf32>
    %53 = arith.mulf %23, %52 : vector<8x128xf32>
    %54 = arith.addf %46, %53 : vector<8x128xf32>
    %c0_6 = arith.constant 0 : index
    %c0_7 = arith.constant 0 : index
    %c0_8 = arith.constant 0 : index
    %55 = vector.load %arg3[%c0_6, %c0_7, %c0_8] : memref<2x8x128xf32, #tpu.memory_space<vmem>>, vector<1x8x128xf32>
    %56 = vector.shape_cast %55 : vector<1x8x128xf32> to vector<8x128xf32>
    %57 = vector.shape_cast %54 : vector<8x128xf32> to vector<1x8x128xf32>
    tpu.vector_store %arg3[%c0_6, %c0_7, %c0_8], %57 {strides = array<i32>} : memref<2x8x128xf32, #tpu.memory_space<vmem>>, vector<1x8x128xf32>,
    %58 = arith.subf %41, %51 : vector<8x128xf32>
    %59 = arith.mulf %23, %58 : vector<8x128xf32>
    %60 = arith.addf %51, %59 : vector<8x128xf32>
    %c1_9 = arith.constant 1 : index
    %c0_10 = arith.constant 0 : index
    %c0_11 = arith.constant 0 : index
    %61 = vector.load %arg3[%c1_9, %c0_10, %c0_11] : memref<2x8x128xf32, #tpu.memory_space<vmem>>, vector<1x8x128xf32>
    %62 = vector.shape_cast %61 : vector<1x8x128xf32> to vector<8x128xf32>
    %63 = vector.shape_cast %60 : vector<8x128xf32> to vector<1x8x128xf32>
    tpu.vector_store %arg3[%c1_9, %c0_10, %c0_11], %63 {strides = array<i32>} : memref<2x8x128xf32, #tpu.memory_space<vmem>>, vector<1x8x128xf32>,
    return
  }
  func.func @transform_0(%arg0: i32) -> i32 {
    %c0_i32 = arith.constant 0 : i32
    %c0_i32_0 = arith.constant 0 : i32
    return %c0_i32 : i32
  }
  func.func @transform_1(%arg0: i32) -> (i32, i32, i32) {
    %c0_i32 = arith.constant 0 : i32
    %c0_i32_0 = arith.constant 0 : i32
    %c0_i32_1 = arith.constant 0 : i32
    return %c0_i32, %c0_i32_0, %arg0 : i32, i32, i32
  }
  func.func @transform_2(%arg0: i32) -> (i32, i32, i32) {
    %c0_i32 = arith.constant 0 : i32
    %c0_i32_0 = arith.constant 0 : i32
    %c0_i32_1 = arith.constant 0 : i32
    return %c0_i32, %c0_i32_0, %arg0 : i32, i32, i32
  }
}

</mosaic_0001>

<llo_original>
// kernel: tpu_custom_call.1
$region0: #{tpu_custom_call.1}
  #allocation0 [shape = 'u32[]', space=smem, size = 0x4, offset = 0x4, fixed_abs, tag = 'smem constant byte address 0x4 - core index']
  #allocation1 [shape = 'u32[144,128]{1,0:T(1,128)}', space=vmem, size = 0x12000, scoped, tag = 'internal scratch']
  %s0 = inlined_call_operand.hbm [shape: f32[10], index: 0, kind: input, shape index: {}]
  %s1 = inlined_call_operand.hbm [shape: f32[2,8,128], index: 1, kind: input, shape index: {}]
  %s2 = inlined_call_operand.hbm [shape: f32[2,8,128], index: 2, kind: output, shape index: {}]
  %s3 = sld [smem:[#allocation0]]
  $region26: #{tpu_custom_call.1} parent=0
    _
  %s5 = ssub.s32 1, %s3
  %s6 = scalar_select 0, %s5, %s3
  $region1: #{tpu_custom_call.1} parent=0
    #allocation2 [shape = 'u8[512]{0}', space=smem, size = 0x200, scoped, tag = 'input window, operand 0, single buffered']
    #allocation3 [shape = 's32[1]{0}', space=sflag, size = 0x4, scoped, tag = 'scoped memory for tpu_custom_call.1']
    #allocation4 [shape = 's32[1]{0}', space=sflag, size = 0x4, scoped, tag = 'scoped memory for tpu_custom_call.1']
    #allocation5 [shape = 's32[1]{0}', space=sflag, size = 0x4, scoped, tag = 'scoped memory for tpu_custom_call.1']
    #allocation6 [shape = 'u8[8192]{0}', space=vmem, size = 0x2000, scoped, tag = 'input window, operand 1, single buffered']
    #allocation7 [shape = 'u8[8192]{0}', space=vmem, size = 0x2000, scoped, tag = 'output window, operand 0, single buffered']
    %7 = vsyncpa [#allocation5], 0
    %8 = vsyncpa [#allocation3], 0
    %9 = vsyncpa [#allocation4], 0
    // Predicated region
    $region2: #{tpu_custom_call.1} parent=1 // pred_check
      _
    $region3: #{tpu_custom_call.1} parent=1 // pred_check_branch
      %11 = sbr.rel (0) target = $region5
    $region4: #{tpu_custom_call.1} parent=1 // pred_region
      %s13 = ssub.s32 16, 16
      %14 = vsyncadd [#allocation5], %s13
      %17 = dma.hbm_to_smem %s0, 16, [#allocation2], [#allocation5]
    $region5: #{tpu_custom_call.1} parent=1 // pred_fallthru
      _
    // Predicated region
    $region6: #{tpu_custom_call.1} parent=1 // pred_check
      _
    $region7: #{tpu_custom_call.1} parent=1 // pred_check_branch
      %19 = sbr.rel (0) target = $region9
    $region8: #{tpu_custom_call.1} parent=1 // pred_region
      %s21 = ssub.s32 256, 256
      %22 = vsyncadd [#allocation3], %s21
      %s23 = sshll.u32 [#allocation6], 4
      %s24 = int_to_ptr.vmem [resolvable:$true] %s23
      %29 = dma.hbm_to_vmem [thread:$0]  %s1, 256, %s24, [#allocation3], 128, 128, 8
    $region9: #{tpu_custom_call.1} parent=1 // pred_fallthru
      _
    // Predicated region
    $region10: #{tpu_custom_call.1} parent=1 // pred_check
      _
    $region11: #{tpu_custom_call.1} parent=1 // pred_check_branch
      %31 = sbr.rel (0) target = $region13
    $region12: #{tpu_custom_call.1} parent=1 // pred_region
      %32 = dma.done [#allocation5], 16
    $region13: #{tpu_custom_call.1} parent=1 // pred_fallthru
      _
    // Predicated region
    $region14: #{tpu_custom_call.1} parent=1 // pred_check
      _
    $region15: #{tpu_custom_call.1} parent=1 // pred_check_branch
      %34 = sbr.rel (0) target = $region17
    $region16: #{tpu_custom_call.1} parent=1 // pred_region
      %35 = dma.done [#allocation3], 256
    $region17: #{tpu_custom_call.1} parent=1 // pred_fallthru
      _
    %36 = sfence
    %s37 = sld [smem:[#allocation2]]
    %s38 = sld [smem:[#allocation2 + $0x1]]
    %s39 = sld [smem:[#allocation2 + $0x2]]
    %s40 = sld [smem:[#allocation2 + $0x3]]
    %s41 = sld [smem:[#allocation2 + $0x4]]
    %s42 = sld [smem:[#allocation2 + $0x5]]
    %s43 = sld [smem:[#allocation2 + $0x6]]
    %s44 = sld [smem:[#allocation2 + $0x7]]
    %s45 = sld [smem:[#allocation2 + $0x8]]
    %s46 = sld [smem:[#allocation2 + $0x9]]
    %v47 = vld [vmem:[#allocation6] sm:$0xff]
    %s48 = scalar_lea.vmem [#allocation6], 8
    %v49 = vld [vmem:[%s48] sm:$0xff]
    %v50 = vstv %s37
    %v51 = vmul.f32 %v47, %v50
    %v52 = vstv %s38
    %v53 = vmul.f32 %v49, %v52
    %v54 = vadd.f32 %v51, %v53
    %v55 = vxor.u32 %v54, 2147483648
    %v56 = vmul.f32 %v55, 1.442695
    %v57 = vpow.pop %v56
    %v58 = vadd.f32 %v57, 1.0
    %v59 = vrcp.pop %v58
    %v60 = vmul.f32 1.0, %v59
    %v61 = vsub.f32 %v47, %v50
    %v62 = vsub.f32 %v49, %v52
    %v63 = vadd.f32 %v47, %v50
    %v64 = vadd.f32 %v49, %v52
    %v65 = vstv %s39
    %v66 = vmul.f32 %v61, %v65
    %v67 = vstv %s40
    %v68 = vmul.f32 %v62, %v67
    %v69 = vadd.f32 %v66, %v68
    %v70 = vstv %s41
    %v71 = vmul.f32 %v61, %v70
    %v72 = vstv %s42
    %v73 = vmul.f32 %v62, %v72
    %v74 = vadd.f32 %v71, %v73
    %v75 = vstv %s43
    %v76 = vmul.f32 %v63, %v75
    %v77 = vstv %s44
    %v78 = vmul.f32 %v64, %v77
    %v79 = vadd.f32 %v76, %v78
    %v80 = vstv %s45
    %v81 = vmul.f32 %v63, %v80
    %v82 = vstv %s46
    %v83 = vmul.f32 %v64, %v82
    %v84 = vadd.f32 %v81, %v83
    %v85 = vsub.f32 %v69, %v79
    %v86 = vmul.f32 %v60, %v85
    %v87 = vadd.f32 %v79, %v86
    %88 = vst [vmem:[#allocation7] sm:$0xff] %v87
    %v89 = vsub.f32 %v74, %v84
    %v90 = vmul.f32 %v60, %v89
    %v91 = vadd.f32 %v84, %v90
    %s92 = scalar_lea.vmem [#allocation7], 8
    %93 = vst [vmem:[%s92] sm:$0xff] %v91
    // Predicated region
    $region18: #{tpu_custom_call.1} parent=1 // pred_check
      _
    $region19: #{tpu_custom_call.1} parent=1 // pred_check_branch
      %95 = sbr.rel (0) target = $region21
    $region20: #{tpu_custom_call.1} parent=1 // pred_region
      %s97 = ssub.s32 256, 256
      %98 = vsyncadd [#allocation4], %s97
      %s99 = sshll.u32 [#allocation7], 4
      %s100 = int_to_ptr.vmem [resolvable:$true] %s99
      %105 = dma.vmem_to_hbm [thread:$0]  %s100, 256, %s2, [#allocation4], 128, 128, 8
    $region21: #{tpu_custom_call.1} parent=1 // pred_fallthru
      _
    // Predicated region
    $region22: #{tpu_custom_call.1} parent=1 // pred_check
      _
    $region23: #{tpu_custom_call.1} parent=1 // pred_check_branch
      %107 = sbr.rel (0) target = $region25
    $region24: #{tpu_custom_call.1} parent=1 // pred_region
      %108 = dma.done [#allocation4], 256
    $region25: #{tpu_custom_call.1} parent=1 // pred_fallthru
      _
    %109 = vsyncpa [#allocation3], 1
    %110 = vsyncpa [#allocation4], 1
    %111 = vsyncpa [#allocation5], 1

</llo_original>
